<compile_context>
chip_gen: v7x
topology: tpu7x:2x2x1
jax: 0.10.0
libtpu: 0.0.40
codegen_flags: <defaults>
</compile_context>

<pallas_src>
import functools

import numpy as np
import jax
import jax.numpy as jnp
from jax.experimental import pallas as pl
from jax.experimental.pallas import tpu as pltpu

# ----------------------------------------------------------------------------
# Small demo config (Siglip2VisionConfig semantics).  The real model uses
# hidden=1152, channels=3, patch=16, num_patches=256 -> K=768, D=1152, PP=256,
# all already multiples of 128 (so none of the padding below triggers).
# ----------------------------------------------------------------------------
HIDDEN_SIZE = 32            # config.hidden_size
NUM_CHANNELS = 3            # config.num_channels
PATCH_SIZE = 4              # config.patch_size
NUM_PATCHES = 16            # config.num_patches
POS_GRID = int(NUM_PATCHES ** 0.5)                       # 4
IN_FEATURES = NUM_CHANNELS * PATCH_SIZE * PATCH_SIZE     # 48

_LANE = 128


def _round_up(x, m):
    return ((x + m - 1) // m) * m


# ----------------------------------------------------------------------------
# Bilinear antialias interpolation weights (torch F.interpolate,
# mode='bilinear', align_corners=False, antialias=True — triangle filter).
# ----------------------------------------------------------------------------
def _aa_bilinear_weights(in_size, out_size):
    scale = in_size / out_size
    support = max(1.0, scale)
    invscale = 1.0 / max(1.0, scale)
    w = np.zeros((out_size, in_size), dtype=np.float64)
    for i in range(out_size):
        center = scale * (i + 0.5)
        xmin = max(int(center - support + 0.5), 0)
        xmax = min(int(center + support + 0.5), in_size)
        ws = np.array(
            [max(0.0, 1.0 - abs((j + xmin - center + 0.5) * invscale))
             for j in range(xmax - xmin)],
            dtype=np.float64,
        )
        tot = ws.sum()
        if tot > 0:
            ws = ws / tot
        w[i, xmin:xmax] = ws
    return w.astype(np.float32)          # [out_size, in_size], rows sum to 1


# ----------------------------------------------------------------------------
# Host-side operand preparation (cacheable per set of weights / shapes)
# ----------------------------------------------------------------------------
def precompute_embedding_operands(params, compute_dtype=jnp.bfloat16):
    """Build grid-resident kernel operands once per set of weights:
       - w_t       : [K, Dp]  patch_w transposed, D zero-padded to a lane multiple
       - pos_table : [PP, Dp] pos embedding rows with the linear bias FOLDED IN
                     (valid because every resize row sums to 1)."""
    patch_w, patch_b, pos_w = params["patch_w"], params["patch_b"], params["pos_w"]
    D, K = patch_w.shape
    Dp = _round_up(D, _LANE)

    w_t = (jnp.zeros((K, Dp), jnp.float32)
           .at[:, :D].set(patch_w.T)).astype(compute_dtype)

    PP = pos_w.shape[0]
    pos_table = (jnp.zeros((PP, Dp), jnp.float32)
                 .at[:, :D].set(pos_w + patch_b[None, :])).astype(compute_dtype)
    return w_t, pos_table


def build_pos_kron_weights(spatial_shapes, compute_dtype=jnp.bfloat16,
                           pos_grid=POS_GRID):
    """Combined resize weights for all packed images: row (y*w + x) of image i
    holds kron(w_h, w_w)[y*w+x, :] over the P*P position grid.  [seq_len, P*P]."""
    rows = []
    for (h, w) in spatial_shapes:
        wh = _aa_bilinear_weights(pos_grid, h)        # [h, P]
        ww = _aa_bilinear_weights(pos_grid, w)        # [w, P]
        rows.append(np.kron(wh, ww))                  # [h*w, P*P]
    kron = np.concatenate(rows, axis=0).astype(np.float32)
    # Bias is folded into pos_table rows -> every resize row must sum to 1.
    assert np.allclose(kron.sum(axis=1), 1.0, atol=1e-5), \
        "resize rows must sum to 1 for the bias fold to be exact"
    return jnp.asarray(kron, dtype=compute_dtype)


# ----------------------------------------------------------------------------
# Fused Pallas kernel: patch linear (+bias) + resized positional embedding
# ----------------------------------------------------------------------------
def _fused_embed_kernel(x_ref, wt_ref, pw_ref, pt_ref, o_ref, acc_ref, *,
                        compute_dtype):
    # Cast the f32 activation stream to the MXU dtype in-kernel (free VPU slot).
    x = x_ref[...].astype(compute_dtype)
    # acc = x @ W_patch.T                         (MXU, bf16 in / f32 acc)
    acc_ref[...] = jnp.dot(x, wt_ref[...], preferred_element_type=jnp.float32)
    # acc += kron_resize @ (pos_table + bias)     (accumulate into same f32 scratch)
    acc_ref[...] += jnp.dot(pw_ref[...], pt_ref[...],
                            preferred_element_type=jnp.float32)
    o_ref[...] = acc_ref[...].astype(o_ref.dtype)


def _pick_tile_s(S, tile_s):
    # >= 2 grid steps when S allows it (v7x shards "parallel" axes over 2 TCs),
    # and a multiple of 16 so bf16 tiles use full sublane packing.
    t = min(tile_s, _round_up(pl.cdiv(S, 2), 16))
    return max(16, min(t, _round_up(S, 16)))


def _vmem_limit_bytes(tile_s, K, PP, Dp, x_bytes, c_bytes, single_buffer_weights):
    out_bytes = c_bytes
    # double-buffered per-step streams: x, pos_kron, output
    streams = 2 * tile_s * (K * x_bytes + PP * c_bytes + Dp * out_bytes)
    # resident weights: single- or double-buffered depending on pipeline_mode
    wbuf = 1 if single_buffer_weights else 2
    weights = wbuf * (K + PP) * Dp * c_bytes
    scratch = tile_s * Dp * 4                      # f32 accumulator
    need = streams + weights + scratch
    try:
        cap = int(pltpu.get_tpu_info().vmem_capacity_bytes)
    except Exception:
        cap = 64 * 2**20                           # v7x per-TC VMEM
    # leave headroom for compiler-internal scratch
    return int(min(cap - 8 * 2**20, max(need + 8 * 2**20, 32 * 2**20)))


def _make_fused_call(S, K, PP, Dp, tile_s, x_dtype, compute_dtype, *,
                     single_buffer_weights):
    c_bytes = jnp.dtype(compute_dtype).itemsize
    x_bytes = jnp.dtype(x_dtype).itemsize
    kernel = functools.partial(_fused_embed_kernel, compute_dtype=compute_dtype)
    w_kw = ({"pipeline_mode": pl.Buffered(buffer_count=1)}
            if single_buffer_weights else {})
    cost = pl.CostEstimate(
        flops=2 * S * (K + PP) * Dp,
        transcendentals=0,
        bytes_accessed=(S * K * x_bytes + S * PP * c_bytes
                        + (K + PP) * Dp * c_bytes + S * Dp * c_bytes),
    )
    return pl.pallas_call(
        kernel,
        out_shape=jax.ShapeDtypeStruct((S, Dp), compute_dtype),
        grid=(pl.cdiv(S, tile_s),),
        in_specs=[
            pl.BlockSpec((tile_s, K), lambda i: (i, 0)),        # x tile (native dtype)
            pl.BlockSpec((K, Dp), lambda i: (0, 0), **w_kw),    # W_patch.T (resident)
            pl.BlockSpec((tile_s, PP), lambda i: (i, 0)),       # pos kron weights tile
            pl.BlockSpec((PP, Dp), lambda i: (0, 0), **w_kw),   # pos table + bias (resident)
        ],
        out_specs=pl.BlockSpec((tile_s, Dp), lambda i: (i, 0)),
        scratch_shapes=[pltpu.VMEM((tile_s, Dp), jnp.float32)],
        compiler_params=pltpu.CompilerParams(
            dimension_semantics=("parallel",),
            vmem_limit_bytes=_vmem_limit_bytes(
                tile_s, K, PP, Dp, x_bytes, c_bytes, single_buffer_weights),
        ),
        cost_estimate=cost,
    )


def fused_embed(x, w_t, pos_kron, pos_table, *, tile_s=1024,
                compute_dtype=jnp.bfloat16):
    """out[s, d] = sum_k x[s,k]*w_t[k,d] + sum_p pos_kron[s,p]*pos_table[p,d]."""
    S, K = x.shape
    Kw, Dp = w_t.shape
    PP = pos_table.shape[0]
    assert Kw == K and pos_table.shape[1] == Dp and pos_kron.shape == (S, PP)

    tile_s = _pick_tile_s(S, tile_s)
    try:
        call = _make_fused_call(S, K, PP, Dp, tile_s, x.dtype, compute_dtype,
                                single_buffer_weights=True)
        return call(x, w_t, pos_kron, pos_table)
    except Exception:
        # Buffered(1) is only a VMEM-headroom optimization; fall back to the
        # default double-buffered resident weights if this jax rejects it.
        call = _make_fused_call(S, K, PP, Dp, tile_s, x.dtype, compute_dtype,
                                single_buffer_weights=False)
        return call(x, w_t, pos_kron, pos_table)


# ----------------------------------------------------------------------------
# Module forward
# ----------------------------------------------------------------------------
def siglip2_sequence_embeddings(seq_patches, spatial_shapes, params, *,
                                compute_dtype=jnp.bfloat16, tile_s=1024):
    """spatial_shapes: static list of (h, w) python ints (one per image).
    In a real model, precompute_embedding_operands / build_pos_kron_weights
    should be cached across calls; they are rebuilt here for a self-contained
    demo.  Output dtype follows compute_dtype (matches the torch module, which
    computes in the patch-embedding weight dtype)."""
    D = params["patch_w"].shape[0]
    w_t, pos_table = precompute_embedding_operands(params, compute_dtype)
    pos_kron = build_pos_kron_weights(spatial_shapes, compute_dtype)

    out = fused_embed(seq_patches, w_t, pos_kron, pos_table,
                      tile_s=tile_s, compute_dtype=compute_dtype)
    # Slice away D padding (no-op for the real config where D=1152 is lane-aligned).
    return out[:, :D] if out.shape[1] != D else out


# ----------------------------------------------------------------------------
# Demo / self-check
# ----------------------------------------------------------------------------
if __name__ == "__main__":
    key = jax.random.PRNGKey(0)
    k1, k2, k3, k4 = jax.random.split(key, 4)

    params = {
        "patch_w": jax.random.normal(k1, (HIDDEN_SIZE, IN_FEATURES), jnp.float32) * 0.02,
        "patch_b": jax.random.normal(k2, (HIDDEN_SIZE,), jnp.float32) * 0.02,
        "pos_w":   jax.random.normal(k3, (NUM_PATCHES, HIDDEN_SIZE), jnp.float32) * 0.02,
    }

    # two packed images: 2x2 and 3x3 patch grids -> seq_len = 13 (ragged tile)
    spatial_shapes = [(2, 2), (3, 3)]
    seq_len = sum(h * w for (h, w) in spatial_shapes)
    seq_patches = jax.random.normal(k4, (seq_len, IN_FEATURES), jnp.float32)

    out = siglip2_sequence_embeddings(seq_patches, spatial_shapes, params)
    out = jax.block_until_ready(out)
    assert out.shape == (seq_len, HIDDEN_SIZE)

    # Independent pure-JAX f32 reference (explicit bias, separable einsum resize).
    g = params["pos_w"].reshape(POS_GRID, POS_GRID, HIDDEN_SIZE)
    pos_ref = []
    for (h, w) in spatial_shapes:
        wh = jnp.asarray(_aa_bilinear_weights(POS_GRID, h), jnp.float32)
        ww = jnp.asarray(_aa_bilinear_weights(POS_GRID, w), jnp.float32)
        pos_ref.append(
            jnp.einsum("yi,xj,ijd->yxd", wh, ww, g).reshape(h * w, HIDDEN_SIZE))
    ref = (seq_patches @ params["patch_w"].T + params["patch_b"]
           + jnp.concatenate(pos_ref, axis=0))

    # bf16 operands + bf16 output with f32 accumulation -> tolerance sized for
    # bf16 rounding; a structural bug (missing bias / pos term) is O(2e-2..1).
    np.testing.assert_allclose(np.asarray(out.astype(jnp.float32)),
                               np.asarray(ref), atol=1e-2, rtol=1e-2)

    print("KERNEL_OK")
</pallas_src>

<mosaic_0001>
module attributes {stable_mosaic.version = 11 : i64} {
  func.func @_fused_embed_kernel(%arg0: i32, %arg1: memref<16x48xf32, #tpu.memory_space<vmem>>, %arg2: memref<48x128xbf16, #tpu.memory_space<vmem>>, %arg3: memref<16x16xbf16, #tpu.memory_space<vmem>>, %arg4: memref<16x128xbf16, #tpu.memory_space<vmem>>, %arg5: memref<16x128xbf16, #tpu.memory_space<vmem>>, %arg6: memref<16x128xf32, #tpu.memory_space<vmem>>) attributes {dimension_semantics = [#tpu.dimension_semantics<parallel>], iteration_bounds = array<i64: 1>, scalar_prefetch = 0 : i64, scratch_operands = 1 : i64, tpu.core_type = #tpu.core_type<tc>, window_params = [{transform_indices = @transform_0, window_bounds = array<i64: 16, 48>}, {pipeline_mode = #tpu.pipeline_mode<synchronous>, transform_indices = @transform_1, window_bounds = array<i64: 48, 128>}, {transform_indices = @transform_2, window_bounds = array<i64: 16, 16>}, {pipeline_mode = #tpu.pipeline_mode<synchronous>, transform_indices = @transform_3, window_bounds = array<i64: 16, 128>}, {transform_indices = @transform_4, window_bounds = array<i64: 16, 128>}]} {
    %c0 = arith.constant 0 : index
    %c0_0 = arith.constant 0 : index
    %0 = vector.load %arg1[%c0, %c0_0] : memref<16x48xf32, #tpu.memory_space<vmem>>, vector<16x48xf32>
    %1 = arith.truncf %0 : vector<16x48xf32> to vector<16x48xbf16>
    %c0_1 = arith.constant 0 : index
    %c0_2 = arith.constant 0 : index
    %2 = vector.load %arg2[%c0_1, %c0_2] : memref<48x128xbf16, #tpu.memory_space<vmem>>, vector<48x128xbf16>
    %cst = arith.constant dense<0.000000e+00> : vector<16x128xf32>
    %3 = tpu.matmul %1, %2, %cst {dimension_numbers = #tpu.dot_dimension_numbers<[1], [0], [0], [1], [0, 0, 1, 1], [], []>} : vector<16x48xbf16>, vector<48x128xbf16>, vector<16x128xf32> -> vector<16x128xf32>
    %c0_3 = arith.constant 0 : index
    %c0_4 = arith.constant 0 : index
    %4 = vector.load %arg6[%c0_3, %c0_4] : memref<16x128xf32, #tpu.memory_space<vmem>>, vector<16x128xf32>
    tpu.vector_store %arg6[%c0_3, %c0_4], %3 {strides = array<i32>} : memref<16x128xf32, #tpu.memory_space<vmem>>, vector<16x128xf32>,
    %c0_5 = arith.constant 0 : index
    %c0_6 = arith.constant 0 : index
    %5 = vector.load %arg6[%c0_5, %c0_6] : memref<16x128xf32, #tpu.memory_space<vmem>>, vector<16x128xf32>
    %c0_7 = arith.constant 0 : index
    %c0_8 = arith.constant 0 : index
    %6 = vector.load %arg3[%c0_7, %c0_8] : memref<16x16xbf16, #tpu.memory_space<vmem>>, vector<16x16xbf16>
    %c0_9 = arith.constant 0 : index
    %c0_10 = arith.constant 0 : index
    %7 = vector.load %arg4[%c0_9, %c0_10] : memref<16x128xbf16, #tpu.memory_space<vmem>>, vector<16x128xbf16>
    %cst_11 = arith.constant dense<0.000000e+00> : vector<16x128xf32>
    %8 = tpu.matmul %6, %7, %cst_11 {dimension_numbers = #tpu.dot_dimension_numbers<[1], [0], [0], [1], [0, 0, 1, 1], [], []>} : vector<16x16xbf16>, vector<16x128xbf16>, vector<16x128xf32> -> vector<16x128xf32>
    %9 = arith.addf %5, %8 : vector<16x128xf32>
    %c0_12 = arith.constant 0 : index
    %c0_13 = arith.constant 0 : index
    %10 = vector.load %arg6[%c0_12, %c0_13] : memref<16x128xf32, #tpu.memory_space<vmem>>, vector<16x128xf32>
    tpu.vector_store %arg6[%c0_12, %c0_13], %9 {strides = array<i32>} : memref<16x128xf32, #tpu.memory_space<vmem>>, vector<16x128xf32>,
    %c0_14 = arith.constant 0 : index
    %c0_15 = arith.constant 0 : index
    %11 = vector.load %arg6[%c0_14, %c0_15] : memref<16x128xf32, #tpu.memory_space<vmem>>, vector<16x128xf32>
    %12 = arith.truncf %11 : vector<16x128xf32> to vector<16x128xbf16>
    %c0_16 = arith.constant 0 : index
    %c0_17 = arith.constant 0 : index
    %13 = vector.load %arg5[%c0_16, %c0_17] : memref<16x128xbf16, #tpu.memory_space<vmem>>, vector<16x128xbf16>
    tpu.vector_store %arg5[%c0_16, %c0_17], %12 {strides = array<i32>} : memref<16x128xbf16, #tpu.memory_space<vmem>>, vector<16x128xbf16>,
    return
  }
  func.func @transform_0(%arg0: i32) -> (i32, i32) {
    %c0_i32 = arith.constant 0 : i32
    %c0_i32_0 = arith.constant 0 : i32
    return %arg0, %c0_i32 : i32, i32
  }
  func.func @transform_1(%arg0: i32) -> (i32, i32) {
    %c0_i32 = arith.constant 0 : i32
    %c0_i32_0 = arith.constant 0 : i32
    %c0_i32_1 = arith.constant 0 : i32
    return %c0_i32, %c0_i32_0 : i32, i32
  }
  func.func @transform_2(%arg0: i32) -> (i32, i32) {
    %c0_i32 = arith.constant 0 : i32
    %c0_i32_0 = arith.constant 0 : i32
    return %arg0, %c0_i32 : i32, i32
  }
  func.func @transform_3(%arg0: i32) -> (i32, i32) {
    %c0_i32 = arith.constant 0 : i32
    %c0_i32_0 = arith.constant 0 : i32
    %c0_i32_1 = arith.constant 0 : i32
    return %c0_i32, %c0_i32_0 : i32, i32
  }
  func.func @transform_4(%arg0: i32) -> (i32, i32) {
    %c0_i32 = arith.constant 0 : i32
    %c0_i32_0 = arith.constant 0 : i32
    return %arg0, %c0_i32 : i32, i32
  }
}

module attributes {stable_mosaic.version = 11 : i64} {
  func.func @_fused_embed_kernel(%arg0: i32, %arg1: memref<16x48xf32, #tpu.memory_space<vmem>>, %arg2: memref<48x128xbf16, #tpu.memory_space<vmem>>, %arg3: memref<16x16xbf16, #tpu.memory_space<vmem>>, %arg4: memref<16x128xbf16, #tpu.memory_space<vmem>>, %arg5: memref<16x128xbf16, #tpu.memory_space<vmem>>, %arg6: memref<16x128xf32, #tpu.memory_space<vmem>>) attributes {dimension_semantics = [#tpu.dimension_semantics<parallel>], iteration_bounds = array<i64: 1>, scalar_prefetch = 0 : i64, scratch_operands = 1 : i64, tpu.core_type = #tpu.core_type<tc>, window_params = [{transform_indices = @transform_0, window_bounds = array<i64: 16, 48>}, {pipeline_mode = #tpu.pipeline_mode<synchronous>, transform_indices = @transform_1, window_bounds = array<i64: 48, 128>}, {transform_indices = @transform_2, window_bounds = array<i64: 16, 16>}, {pipeline_mode = #tpu.pipeline_mode<synchronous>, transform_indices = @transform_3, window_bounds = array<i64: 16, 128>}, {transform_indices = @transform_4, window_bounds = array<i64: 16, 128>}]} {
    %c0 = arith.constant 0 : index
    %c0_0 = arith.constant 0 : index
    %0 = vector.load %arg1[%c0, %c0_0] : memref<16x48xf32, #tpu.memory_space<vmem>>, vector<16x48xf32>
    %1 = arith.truncf %0 : vector<16x48xf32> to vector<16x48xbf16>
    %c0_1 = arith.constant 0 : index
    %c0_2 = arith.constant 0 : index
    %2 = vector.load %arg2[%c0_1, %c0_2] : memref<48x128xbf16, #tpu.memory_space<vmem>>, vector<48x128xbf16>
    %cst = arith.constant dense<0.000000e+00> : vector<16x128xf32>
    %3 = tpu.matmul %1, %2, %cst {dimension_numbers = #tpu.dot_dimension_numbers<[1], [0], [0], [1], [0, 0, 1, 1], [], []>} : vector<16x48xbf16>, vector<48x128xbf16>, vector<16x128xf32> -> vector<16x128xf32>
    %c0_3 = arith.constant 0 : index
    %c0_4 = arith.constant 0 : index
    %4 = vector.load %arg6[%c0_3, %c0_4] : memref<16x128xf32, #tpu.memory_space<vmem>>, vector<16x128xf32>
    tpu.vector_store %arg6[%c0_3, %c0_4], %3 {strides = array<i32>} : memref<16x128xf32, #tpu.memory_space<vmem>>, vector<16x128xf32>,
    %c0_5 = arith.constant 0 : index
    %c0_6 = arith.constant 0 : index
    %5 = vector.load %arg6[%c0_5, %c0_6] : memref<16x128xf32, #tpu.memory_space<vmem>>, vector<16x128xf32>
    %c0_7 = arith.constant 0 : index
    %c0_8 = arith.constant 0 : index
    %6 = vector.load %arg3[%c0_7, %c0_8] : memref<16x16xbf16, #tpu.memory_space<vmem>>, vector<16x16xbf16>
    %c0_9 = arith.constant 0 : index
    %c0_10 = arith.constant 0 : index
    %7 = vector.load %arg4[%c0_9, %c0_10] : memref<16x128xbf16, #tpu.memory_space<vmem>>, vector<16x128xbf16>
    %cst_11 = arith.constant dense<0.000000e+00> : vector<16x128xf32>
    %8 = tpu.matmul %6, %7, %cst_11 {dimension_numbers = #tpu.dot_dimension_numbers<[1], [0], [0], [1], [0, 0, 1, 1], [], []>} : vector<16x16xbf16>, vector<16x128xbf16>, vector<16x128xf32> -> vector<16x128xf32>
    %9 = arith.addf %5, %8 : vector<16x128xf32>
    %c0_12 = arith.constant 0 : index
    %c0_13 = arith.constant 0 : index
    %10 = vector.load %arg6[%c0_12, %c0_13] : memref<16x128xf32, #tpu.memory_space<vmem>>, vector<16x128xf32>
    tpu.vector_store %arg6[%c0_12, %c0_13], %9 {strides = array<i32>} : memref<16x128xf32, #tpu.memory_space<vmem>>, vector<16x128xf32>,
    %c0_14 = arith.constant 0 : index
    %c0_15 = arith.constant 0 : index
    %11 = vector.load %arg6[%c0_14, %c0_15] : memref<16x128xf32, #tpu.memory_space<vmem>>, vector<16x128xf32>
    %12 = arith.truncf %11 : vector<16x128xf32> to vector<16x128xbf16>
    %c0_16 = arith.constant 0 : index
    %c0_17 = arith.constant 0 : index
    %13 = vector.load %arg5[%c0_16, %c0_17] : memref<16x128xbf16, #tpu.memory_space<vmem>>, vector<16x128xbf16>
    tpu.vector_store %arg5[%c0_16, %c0_17], %12 {strides = array<i32>} : memref<16x128xbf16, #tpu.memory_space<vmem>>, vector<16x128xbf16>,
    return
  }
  func.func @transform_0(%arg0: i32) -> (i32, i32) {
    %c0_i32 = arith.constant 0 : i32
    %c0_i32_0 = arith.constant 0 : i32
    return %arg0, %c0_i32 : i32, i32
  }
  func.func @transform_1(%arg0: i32) -> (i32, i32) {
    %c0_i32 = arith.constant 0 : i32
    %c0_i32_0 = arith.constant 0 : i32
    %c0_i32_1 = arith.constant 0 : i32
    return %c0_i32, %c0_i32_0 : i32, i32
  }
  func.func @transform_2(%arg0: i32) -> (i32, i32) {
    %c0_i32 = arith.constant 0 : i32
    %c0_i32_0 = arith.constant 0 : i32
    return %arg0, %c0_i32 : i32, i32
  }
  func.func @transform_3(%arg0: i32) -> (i32, i32) {
    %c0_i32 = arith.constant 0 : i32
    %c0_i32_0 = arith.constant 0 : i32
    %c0_i32_1 = arith.constant 0 : i32
    return %c0_i32, %c0_i32_0 : i32, i32
  }
  func.func @transform_4(%arg0: i32) -> (i32, i32) {
    %c0_i32 = arith.constant 0 : i32
    %c0_i32_0 = arith.constant 0 : i32
    return %arg0, %c0_i32 : i32, i32
  }
}

</mosaic_0001>

<llo_original>
// kernel: tpu_custom_call.1
$region0: #{tpu_custom_call.1}
  #allocation0 [shape = 'u32[]', space=smem, size = 0x4, offset = 0x4, fixed_abs, tag = 'smem constant byte address 0x4 - core index']
  #allocation1 [shape = 'u32[144,128]{1,0:T(1,128)}', space=vmem, size = 0x12000, scoped, tag = 'internal scratch']
  #allocation2 [shape = 'f32[16,128]{1,0:T(8,128)}', space=vmem, size = 0x2000, scoped, tag = 'scratch operand']
  %s0 = inlined_call_operand.hbm [shape: f32[13,48], index: 0, kind: input, shape index: {}]
  %s1 = inlined_call_operand.hbm [shape: bf16[48,128], index: 1, kind: input, shape index: {}]
  %s2 = inlined_call_operand.hbm [shape: bf16[13,16], index: 2, kind: input, shape index: {}]
  %s3 = inlined_call_operand.vmem [shape: bf16[16,128], index: 3, kind: input, shape index: {}]
  %s4 = inlined_call_operand.hbm [shape: bf16[13,128], index: 4, kind: output, shape index: {}]
  %s5 = sld [smem:[#allocation0]]
  $region38: #{tpu_custom_call.1} parent=0
    _
  %s7 = ssub.s32 1, %s5
  %s8 = scalar_select 0, %s7, %s5
  $region1: #{tpu_custom_call.1} parent=0
    #allocation3 [shape = 'u8[8192]{0}', space=vmem, size = 0x2000, scoped, tag = 'input window, operand 0, single buffered']
    #allocation4 [shape = 's32[1]{0}', space=sflag, size = 0x4, scoped, tag = 'scoped memory for tpu_custom_call.1']
    #allocation5 [shape = 's32[1]{0}', space=sflag, size = 0x4, scoped, tag = 'scoped memory for tpu_custom_call.1']
    #allocation6 [shape = 'u8[12288]{0}', space=vmem, size = 0x3000, scoped, tag = 'input window, operand 1, single buffered']
    #allocation7 [shape = 's32[1]{0}', space=sflag, size = 0x4, scoped, tag = 'scoped memory for tpu_custom_call.1']
    #allocation8 [shape = 'u8[4096]{0}', space=vmem, size = 0x1000, scoped, tag = 'input window, operand 2, single buffered']
    #allocation9 [shape = 'u8[4096]{0}', space=vmem, size = 0x1000, scoped, tag = 'output window, operand 0, single buffered']
    %9 = vsyncpa [#allocation4], 0
    %10 = vsyncpa [#allocation7], 0
    %11 = vsyncpa [#allocation5], 0
    // Predicated region
    $region2: #{tpu_custom_call.1} parent=1 // pred_check
      _
    $region3: #{tpu_custom_call.1} parent=1 // pred_check_branch
      %13 = sbr.rel (0) target = $region5
    $region4: #{tpu_custom_call.1} parent=1 // pred_region
      %s15 = ssub.s32 256, 256
      %16 = vsyncadd [#allocation4], %s15
      %s17 = sshll.u32 [#allocation3], 4
      %s18 = int_to_ptr.vmem [resolvable:$true] %s17
      %23 = dma.hbm_to_vmem [thread:$0]  %s0, 256, %s18, [#allocation4], 128, 128, 8
    $region5: #{tpu_custom_call.1} parent=1 // pred_fallthru
      _
    // Predicated region
    $region6: #{tpu_custom_call.1} parent=1 // pred_check
      _
    $region7: #{tpu_custom_call.1} parent=1 // pred_check_branch
      %25 = sbr.rel (0) target = $region9
    $region8: #{tpu_custom_call.1} parent=1 // pred_region
      %s27 = ssub.s32 384, 384
      %28 = vsyncadd [#allocation7], %s27
      %s29 = sshll.u32 [#allocation6], 4
      %s30 = int_to_ptr.vmem [resolvable:$true] %s29
      %35 = dma.hbm_to_vmem [thread:$0]  %s1, 384, %s30, [#allocation7], 64, 64, 4
    $region9: #{tpu_custom_call.1} parent=1 // pred_fallthru
      _
    // Predicated region
    $region10: #{tpu_custom_call.1} parent=1 // pred_check
      _
    $region11: #{tpu_custom_call.1} parent=1 // pred_check_branch
      %37 = sbr.rel (0) target = $region13
    $region12: #{tpu_custom_call.1} parent=1 // pred_region
      %s39 = ssub.s32 128, 128
      %40 = vsyncadd [#allocation7], %s39
      %s41 = sshll.u32 [#allocation8], 4
      %s42 = int_to_ptr.vmem [resolvable:$true] %s41
      %47 = dma.hbm_to_vmem [thread:$0]  %s2, 128, %s42, [#allocation7], 64, 64, 4
    $region13: #{tpu_custom_call.1} parent=1 // pred_fallthru
      _
    // Predicated region
    $region14: #{tpu_custom_call.1} parent=1 // pred_check
      _
    $region15: #{tpu_custom_call.1} parent=1 // pred_check_branch
      %49 = sbr.rel (0) target = $region17
    $region16: #{tpu_custom_call.1} parent=1 // pred_region
      _
    $region17: #{tpu_custom_call.1} parent=1 // pred_fallthru
      _
    // Predicated region
    $region18: #{tpu_custom_call.1} parent=1 // pred_check
      _
    $region19: #{tpu_custom_call.1} parent=1 // pred_check_branch
      %51 = sbr.rel (0) target = $region21
    $region20: #{tpu_custom_call.1} parent=1 // pred_region
      %52 = dma.done [#allocation4], 256
    $region21: #{tpu_custom_call.1} parent=1 // pred_fallthru
      _
    // Predicated region
    $region22: #{tpu_custom_call.1} parent=1 // pred_check
      _
    $region23: #{tpu_custom_call.1} parent=1 // pred_check_branch
      %54 = sbr.rel (0) target = $region25
    $region24: #{tpu_custom_call.1} parent=1 // pred_region
      %55 = dma.done [#allocation7], 384
    $region25: #{tpu_custom_call.1} parent=1 // pred_fallthru
      _
    // Predicated region
    $region26: #{tpu_custom_call.1} parent=1 // pred_check
      _
    $region27: #{tpu_custom_call.1} parent=1 // pred_check_branch
      %57 = sbr.rel (0) target = $region29
    $region28: #{tpu_custom_call.1} parent=1 // pred_region
      %58 = dma.done [#allocation7], 128
    $region29: #{tpu_custom_call.1} parent=1 // pred_fallthru
      _
    %v60 = vld [vmem:[#allocation3] sm:$0xff]
    %v61 = vld [vmem:[#allocation3 + $0x8] sm:$0xff]
    %v62 = vpack.c.bf16 %v61, %v60
    %v63 = vld [vmem:[#allocation6] sm:$0xf]
    %v64 = vld [vmem:[#allocation6 + $0x4] sm:$0xf]
    %v65 = vld [vmem:[#allocation6 + $0x8] sm:$0xf]
    %v66 = vld [vmem:[#allocation6 + $0xc] sm:$0xf]
    %v67 = vld [vmem:[#allocation6 + $0x10] sm:$0xf]
    %v68 = vld [vmem:[#allocation6 + $0x14] sm:$0xf]
    %v75 = vunpack.c.l.b16 %v63
    %v76 = vunpack.c.l.b16 %v64
    %v77 = vunpack.c.l.b16 %v65
    %v78 = vunpack.c.l.b16 %v66
    %v79 = vunpack.c.l.b16 %v67
    %v80 = vunpack.c.l.b16 %v68
    %v81 = vpack.c.b16 %v76, %v75
    %v82 = vpack.c.b16 %v78, %v77
    %v83 = vpack.c.b16 %v80, %v79
    %vm87 = vcmask 392192
    %v89 = vsel %vm87, %v62, 0
    %91 = vmatprep.subr.bf16.mxu0 0
    %92 = vmatpush1.bf16.msra.mxu0 %v81
    %93 = vmatprep.subr.bf16.mxu0 0
    %94 = vmatpush1.bf16.msra.mxu0 %v82
    %95 = vmatprep.subr.bf16.mxu0 0
    %96 = vmatpush1.bf16.msra.mxu0 %v83
    %97 = vmatprep.subr.bf16.mxu0 0
    %98 = vmatpush1.bf16.msra.mxu0 0
    %99 = vmatprep.subr.bf16.mxu0 0
    %100 = vmatpush1.bf16.msra.mxu0 0
    %101 = vmatprep.subr.bf16.mxu0 0
    %102 = vmatpush1.bf16.msra.mxu0 0
    %103 = vmatprep.subr.bf16.mxu0 0
    %104 = vmatpush1.bf16.msra.mxu0 0
    %105 = vmatprep.subr.bf16.mxu0 0
    %106 = vmatpush1.bf16.msra.mxu0 0
    %107 = vmatprep.subr.bf16.mxu0 0
    %108 = vmatpush1.bf16.msra.mxu0 0
    %109 = vmatprep.subr.bf16.mxu0 0
    %110 = vmatpush1.bf16.msra.mxu0 0
    %111 = vmatprep.subr.bf16.mxu0 0
    %112 = vmatpush1.bf16.msra.mxu0 0
    %113 = vmatprep.subr.bf16.mxu0 0
    %114 = vmatpush1.bf16.msra.mxu0 0
    %115 = vmatprep.subr.bf16.mxu0 0
    %116 = vmatpush1.bf16.msra.mxu0 0
    %117 = vmatprep.subr.bf16.mxu0 0
    %118 = vmatpush1.bf16.msra.mxu0 0
    %119 = vmatprep.subr.bf16.mxu0 0
    %120 = vmatpush1.bf16.msra.mxu0 0
    %121 = vmatprep.subr.bf16.mxu0 0
    %122 = vmatpush1.bf16.msra.mxu0 0
    %123 = vmatprep.mubr.bf16.mxu0 0
    %124 = vmatmul.mubr.bf16.gmra.mrb[0].mxu0 %v89
    %v125 = vpop.f32.mrb[0].mxu0
    %v126 = vadd.f32 0.0, %v125
    %v127 = vpop.f32.mrb[0].mxu0
    %v128 = vpop.f32.mrb[0].mxu0
    %v129 = vadd.f32 0.0, %v128
    %v130 = vpop.f32.mrb[0].mxu0
    %131 = vdwg.mxu0
    %132 = vst [vmem:[#allocation2] sm:$0xff] %v126
    %133 = vst [vmem:[#allocation2 + $0x8] sm:$0xff] %v129
    %v134 = vld [vmem:[#allocation2] sm:$0xff]
    %v135 = vld [vmem:[#allocation2 + $0x8] sm:$0xff]
    %v136 = vld [vmem:[#allocation8] sm:$0xf]
    %v137 = vld [vmem:[#allocation8 + $0x4] sm:$0xf]
    %v138 = vld [vmem:[%s3] sm:$0xf]
    %v139 = vld [vmem:[%s3 + $0x4] sm:$0xf]
    %v142 = vunpack.c.l.b16 %v136
    %v143 = vunpack.c.l.b16 %v137
    %v144 = vpack.c.b16 %v143, %v142
    %v147 = vunpack.c.l.b16 %v138
    %v148 = vunpack.c.l.b16 %v139
    %v149 = vpack.c.b16 %v148, %v147
    %vm151 = vcmask 130048
    %v153 = vsel %vm151, %v144, 0
    %155 = vmatprep.subr.bf16.mxu0 0
    %156 = vmatpush1.bf16.msra.mxu0 %v149
    %157 = vmatprep.subr.bf16.mxu0 0
    %158 = vmatpush1.bf16.msra.mxu0 0
    %159 = vmatprep.subr.bf16.mxu0 0
    %160 = vmatpush1.bf16.msra.mxu0 0
    %161 = vmatprep.subr.bf16.mxu0 0
    %162 = vmatpush1.bf16.msra.mxu0 0
    %163 = vmatprep.subr.bf16.mxu0 0
    %164 = vmatpush1.bf16.msra.mxu0 0
    %165 = vmatprep.subr.bf16.mxu0 0
    %166 = vmatpush1.bf16.msra.mxu0 0
    %167 = vmatprep.subr.bf16.mxu0 0
    %168 = vmatpush1.bf16.msra.mxu0 0
    %169 = vmatprep.subr.bf16.mxu0 0
    %170 = vmatpush1.bf16.msra.mxu0 0
    %171 = vmatprep.subr.bf16.mxu0 0
    %172 = vmatpush1.bf16.msra.mxu0 0
    %173 = vmatprep.subr.bf16.mxu0 0
    %174 = vmatpush1.bf16.msra.mxu0 0
    %175 = vmatprep.subr.bf16.mxu0 0
    %176 = vmatpush1.bf16.msra.mxu0 0
    %177 = vmatprep.subr.bf16.mxu0 0
    %178 = vmatpush1.bf16.msra.mxu0 0
    %179 = vmatprep.subr.bf16.mxu0 0
    %180 = vmatpush1.bf16.msra.mxu0 0
    %181 = vmatprep.subr.bf16.mxu0 0
    %182 = vmatpush1.bf16.msra.mxu0 0
    %183 = vmatprep.subr.bf16.mxu0 0
    %184 = vmatpush1.bf16.msra.mxu0 0
    %185 = vmatprep.subr.bf16.mxu0 0
    %186 = vmatpush1.bf16.msra.mxu0 0
    %187 = vmatprep.mubr.bf16.mxu0 0
    %188 = vmatmul.mubr.bf16.gmra.mrb[0].mxu0 %v153
    %v189 = vpop.f32.mrb[0].mxu0
    %v190 = vadd.f32 0.0, %v189
    %v191 = vpop.f32.mrb[0].mxu0
    %v192 = vpop.f32.mrb[0].mxu0
    %v193 = vadd.f32 0.0, %v192
    %v194 = vpop.f32.mrb[0].mxu0
    %195 = vdwg.mxu0
    %v196 = vadd.f32 %v134, %v190
    %v197 = vadd.f32 %v135, %v193
    %198 = vst [vmem:[#allocation2] sm:$0xff] %v196
    %199 = vst [vmem:[#allocation2 + $0x8] sm:$0xff] %v197
    %v200 = vld [vmem:[#allocation2] sm:$0xff]
    %v201 = vld [vmem:[#allocation2 + $0x8] sm:$0xff]
    %v202 = vpack.c.bf16 %v201, %v200
    %v204 = vunpack.c.l.b16 %v202
    %v205 = vunpack.c.h.b16 %v202
    %v206 = vpack.c.b16 %v204, %v204
    %v207 = vpack.c.b16 %v205, %v205
    %210 = vst [vmem:[#allocation9] sm:$0xf] %v206
    %211 = vst [vmem:[#allocation9 + $0x4] sm:$0xf] %v207
    // Predicated region
    $region30: #{tpu_custom_call.1} parent=1 // pred_check
      _
    $region31: #{tpu_custom_call.1} parent=1 // pred_check_branch
      %213 = sbr.rel (0) target = $region33
    $region32: #{tpu_custom_call.1} parent=1 // pred_region
      %s215 = ssub.s32 128, 128
      %216 = vsyncadd [#allocation5], %s215
      %s217 = sshll.u32 [#allocation9], 4
      %s218 = int_to_ptr.vmem [resolvable:$true] %s217
      %223 = dma.vmem_to_hbm [thread:$0]  %s218, 128, %s4, [#allocation5], 64, 64, 4
    $region33: #{tpu_custom_call.1} parent=1 // pred_fallthru
      _
    // Predicated region
    $region34: #{tpu_custom_call.1} parent=1 // pred_check
      _
    $region35: #{tpu_custom_call.1} parent=1 // pred_check_branch
      %225 = sbr.rel (0) target = $region37
    $region36: #{tpu_custom_call.1} parent=1 // pred_region
      %226 = dma.done [#allocation5], 128
    $region37: #{tpu_custom_call.1} parent=1 // pred_fallthru
      _
    %227 = vsyncpa [#allocation4], 1
    %228 = vsyncpa [#allocation7], 1
    %229 = vsyncpa [#allocation5], 1

// kernel: tpu_custom_call.1
$region0: #{tpu_custom_call.1}
  #allocation0 [shape = 'u32[]', space=smem, size = 0x4, offset = 0x4, fixed_abs, tag = 'smem constant byte address 0x4 - core index']
  #allocation1 [shape = 'u32[144,128]{1,0:T(1,128)}', space=vmem, size = 0x12000, scoped, tag = 'internal scratch']
  #allocation2 [shape = 'f32[16,128]{1,0:T(8,128)}', space=vmem, size = 0x2000, scoped, tag = 'scratch operand']
  %s0 = inlined_call_operand.hbm [shape: f32[13,48], index: 0, kind: input, shape index: {}]
  %s1 = inlined_call_operand.hbm [shape: bf16[48,128], index: 1, kind: input, shape index: {}]
  %s2 = inlined_call_operand.hbm [shape: bf16[13,16], index: 2, kind: input, shape index: {}]
  %s3 = inlined_call_operand.vmem [shape: bf16[16,128], index: 3, kind: input, shape index: {}]
  %s4 = inlined_call_operand.hbm [shape: bf16[13,128], index: 4, kind: output, shape index: {}]
  %s5 = sld [smem:[#allocation0]]
  $region38: #{tpu_custom_call.1} parent=0
    _
  %s7 = ssub.s32 1, %s5
  %s8 = scalar_select 0, %s7, %s5
  $region1: #{tpu_custom_call.1} parent=0
    #allocation3 [shape = 'u8[8192]{0}', space=vmem, size = 0x2000, scoped, tag = 'input window, operand 0, single buffered']
    #allocation4 [shape = 's32[1]{0}', space=sflag, size = 0x4, scoped, tag = 'scoped memory for tpu_custom_call.1']
    #allocation5 [shape = 's32[1]{0}', space=sflag, size = 0x4, scoped, tag = 'scoped memory for tpu_custom_call.1']
    #allocation6 [shape = 'u8[12288]{0}', space=vmem, size = 0x3000, scoped, tag = 'input window, operand 1, single buffered']
    #allocation7 [shape = 's32[1]{0}', space=sflag, size = 0x4, scoped, tag = 'scoped memory for tpu_custom_call.1']
    #allocation8 [shape = 'u8[4096]{0}', space=vmem, size = 0x1000, scoped, tag = 'input window, operand 2, single buffered']
    #allocation9 [shape = 'u8[4096]{0}', space=vmem, size = 0x1000, scoped, tag = 'output window, operand 0, single buffered']
    %9 = vsyncpa [#allocation4], 0
    %10 = vsyncpa [#allocation7], 0
    %11 = vsyncpa [#allocation5], 0
    // Predicated region
    $region2: #{tpu_custom_call.1} parent=1 // pred_check
      _
    $region3: #{tpu_custom_call.1} parent=1 // pred_check_branch
      %13 = sbr.rel (0) target = $region5
    $region4: #{tpu_custom_call.1} parent=1 // pred_region
      %s15 = ssub.s32 256, 256
      %16 = vsyncadd [#allocation4], %s15
      %s17 = sshll.u32 [#allocation3], 4
      %s18 = int_to_ptr.vmem [resolvable:$true] %s17
      %23 = dma.hbm_to_vmem [thread:$0]  %s0, 256, %s18, [#allocation4], 128, 128, 8
    $region5: #{tpu_custom_call.1} parent=1 // pred_fallthru
      _
    // Predicated region
    $region6: #{tpu_custom_call.1} parent=1 // pred_check
      _
    $region7: #{tpu_custom_call.1} parent=1 // pred_check_branch
      %25 = sbr.rel (0) target = $region9
    $region8: #{tpu_custom_call.1} parent=1 // pred_region
      %s27 = ssub.s32 384, 384
      %28 = vsyncadd [#allocation7], %s27
      %s29 = sshll.u32 [#allocation6], 4
      %s30 = int_to_ptr.vmem [resolvable:$true] %s29
      %35 = dma.hbm_to_vmem [thread:$0]  %s1, 384, %s30, [#allocation7], 64, 64, 4
    $region9: #{tpu_custom_call.1} parent=1 // pred_fallthru
      _
    // Predicated region
    $region10: #{tpu_custom_call.1} parent=1 // pred_check
      _
    $region11: #{tpu_custom_call.1} parent=1 // pred_check_branch
      %37 = sbr.rel (0) target = $region13
    $region12: #{tpu_custom_call.1} parent=1 // pred_region
      %s39 = ssub.s32 128, 128
      %40 = vsyncadd [#allocation7], %s39
      %s41 = sshll.u32 [#allocation8], 4
      %s42 = int_to_ptr.vmem [resolvable:$true] %s41
      %47 = dma.hbm_to_vmem [thread:$0]  %s2, 128, %s42, [#allocation7], 64, 64, 4
    $region13: #{tpu_custom_call.1} parent=1 // pred_fallthru
      _
    // Predicated region
    $region14: #{tpu_custom_call.1} parent=1 // pred_check
      _
    $region15: #{tpu_custom_call.1} parent=1 // pred_check_branch
      %49 = sbr.rel (0) target = $region17
    $region16: #{tpu_custom_call.1} parent=1 // pred_region
      _
    $region17: #{tpu_custom_call.1} parent=1 // pred_fallthru
      _
    // Predicated region
    $region18: #{tpu_custom_call.1} parent=1 // pred_check
      _
    $region19: #{tpu_custom_call.1} parent=1 // pred_check_branch
      %51 = sbr.rel (0) target = $region21
    $region20: #{tpu_custom_call.1} parent=1 // pred_region
      %52 = dma.done [#allocation4], 256
    $region21: #{tpu_custom_call.1} parent=1 // pred_fallthru
      _
    // Predicated region
    $region22: #{tpu_custom_call.1} parent=1 // pred_check
      _
    $region23: #{tpu_custom_call.1} parent=1 // pred_check_branch
      %54 = sbr.rel (0) target = $region25
    $region24: #{tpu_custom_call.1} parent=1 // pred_region
      %55 = dma.done [#allocation7], 384
    $region25: #{tpu_custom_call.1} parent=1 // pred_fallthru
      _
    // Predicated region
    $region26: #{tpu_custom_call.1} parent=1 // pred_check
      _
    $region27: #{tpu_custom_call.1} parent=1 // pred_check_branch
      %57 = sbr.rel (0) target = $region29
    $region28: #{tpu_custom_call.1} parent=1 // pred_region
      %58 = dma.done [#allocation7], 128
    $region29: #{tpu_custom_call.1} parent=1 // pred_fallthru
      _
    %v60 = vld [vmem:[#allocation3] sm:$0xff]
    %v61 = vld [vmem:[#allocation3 + $0x8] sm:$0xff]
    %v62 = vpack.c.bf16 %v61, %v60
    %v63 = vld [vmem:[#allocation6] sm:$0xf]
    %v64 = vld [vmem:[#allocation6 + $0x4] sm:$0xf]
    %v65 = vld [vmem:[#allocation6 + $0x8] sm:$0xf]
    %v66 = vld [vmem:[#allocation6 + $0xc] sm:$0xf]
    %v67 = vld [vmem:[#allocation6 + $0x10] sm:$0xf]
    %v68 = vld [vmem:[#allocation6 + $0x14] sm:$0xf]
    %v75 = vunpack.c.l.b16 %v63
    %v76 = vunpack.c.l.b16 %v64
    %v77 = vunpack.c.l.b16 %v65
    %v78 = vunpack.c.l.b16 %v66
    %v79 = vunpack.c.l.b16 %v67
    %v80 = vunpack.c.l.b16 %v68
    %v81 = vpack.c.b16 %v76, %v75
    %v82 = vpack.c.b16 %v78, %v77
    %v83 = vpack.c.b16 %v80, %v79
    %vm87 = vcmask 392192
    %v89 = vsel %vm87, %v62, 0
    %91 = vmatprep.subr.bf16.mxu0 0
    %92 = vmatpush1.bf16.msra.mxu0 %v81
    %93 = vmatprep.subr.bf16.mxu0 0
    %94 = vmatpush1.bf16.msra.mxu0 %v82
    %95 = vmatprep.subr.bf16.mxu0 0
    %96 = vmatpush1.bf16.msra.mxu0 %v83
    %97 = vmatprep.subr.bf16.mxu0 0
    %98 = vmatpush1.bf16.msra.mxu0 0
    %99 = vmatprep.subr.bf16.mxu0 0
    %100 = vmatpush1.bf16.msra.mxu0 0
    %101 = vmatprep.subr.bf16.mxu0 0
    %102 = vmatpush1.bf16.msra.mxu0 0
    %103 = vmatprep.subr.bf16.mxu0 0
    %104 = vmatpush1.bf16.msra.mxu0 0
    %105 = vmatprep.subr.bf16.mxu0 0
    %106 = vmatpush1.bf16.msra.mxu0 0
    %107 = vmatprep.subr.bf16.mxu0 0
    %108 = vmatpush1.bf16.msra.mxu0 0
    %109 = vmatprep.subr.bf16.mxu0 0
    %110 = vmatpush1.bf16.msra.mxu0 0
    %111 = vmatprep.subr.bf16.mxu0 0
    %112 = vmatpush1.bf16.msra.mxu0 0
    %113 = vmatprep.subr.bf16.mxu0 0
    %114 = vmatpush1.bf16.msra.mxu0 0
    %115 = vmatprep.subr.bf16.mxu0 0
    %116 = vmatpush1.bf16.msra.mxu0 0
    %117 = vmatprep.subr.bf16.mxu0 0
    %118 = vmatpush1.bf16.msra.mxu0 0
    %119 = vmatprep.subr.bf16.mxu0 0
    %120 = vmatpush1.bf16.msra.mxu0 0
    %121 = vmatprep.subr.bf16.mxu0 0
    %122 = vmatpush1.bf16.msra.mxu0 0
    %123 = vmatprep.mubr.bf16.mxu0 0
    %124 = vmatmul.mubr.bf16.gmra.mrb[0].mxu0 %v89
    %v125 = vpop.f32.mrb[0].mxu0
    %v126 = vadd.f32 0.0, %v125
    %v127 = vpop.f32.mrb[0].mxu0
    %v128 = vpop.f32.mrb[0].mxu0
    %v129 = vadd.f32 0.0, %v128
    %v130 = vpop.f32.mrb[0].mxu0
    %131 = vdwg.mxu0
    %132 = vst [vmem:[#allocation2] sm:$0xff] %v126
    %133 = vst [vmem:[#allocation2 + $0x8] sm:$0xff] %v129
    %v134 = vld [vmem:[#allocation2] sm:$0xff]
    %v135 = vld [vmem:[#allocation2 + $0x8] sm:$0xff]
    %v136 = vld [vmem:[#allocation8] sm:$0xf]
    %v137 = vld [vmem:[#allocation8 + $0x4] sm:$0xf]
    %v138 = vld [vmem:[%s3] sm:$0xf]
    %v139 = vld [vmem:[%s3 + $0x4] sm:$0xf]
    %v142 = vunpack.c.l.b16 %v136
    %v143 = vunpack.c.l.b16 %v137
    %v144 = vpack.c.b16 %v143, %v142
    %v147 = vunpack.c.l.b16 %v138
    %v148 = vunpack.c.l.b16 %v139
    %v149 = vpack.c.b16 %v148, %v147
    %vm151 = vcmask 130048
    %v153 = vsel %vm151, %v144, 0
    %155 = vmatprep.subr.bf16.mxu0 0
    %156 = vmatpush1.bf16.msra.mxu0 %v149
    %157 = vmatprep.subr.bf16.mxu0 0
    %158 = vmatpush1.bf16.msra.mxu0 0
    %159 = vmatprep.subr.bf16.mxu0 0
    %160 = vmatpush1.bf16.msra.mxu0 0
    %161 = vmatprep.subr.bf16.mxu0 0
    %162 = vmatpush1.bf16.msra.mxu0 0
    %163 = vmatprep.subr.bf16.mxu0 0
    %164 = vmatpush1.bf16.msra.mxu0 0
    %165 = vmatprep.subr.bf16.mxu0 0
    %166 = vmatpush1.bf16.msra.mxu0 0
    %167 = vmatprep.subr.bf16.mxu0 0
    %168 = vmatpush1.bf16.msra.mxu0 0
    %169 = vmatprep.subr.bf16.mxu0 0
    %170 = vmatpush1.bf16.msra.mxu0 0
    %171 = vmatprep.subr.bf16.mxu0 0
    %172 = vmatpush1.bf16.msra.mxu0 0
    %173 = vmatprep.subr.bf16.mxu0 0
    %174 = vmatpush1.bf16.msra.mxu0 0
    %175 = vmatprep.subr.bf16.mxu0 0
    %176 = vmatpush1.bf16.msra.mxu0 0
    %177 = vmatprep.subr.bf16.mxu0 0
    %178 = vmatpush1.bf16.msra.mxu0 0
    %179 = vmatprep.subr.bf16.mxu0 0
    %180 = vmatpush1.bf16.msra.mxu0 0
    %181 = vmatprep.subr.bf16.mxu0 0
    %182 = vmatpush1.bf16.msra.mxu0 0
    %183 = vmatprep.subr.bf16.mxu0 0
    %184 = vmatpush1.bf16.msra.mxu0 0
    %185 = vmatprep.subr.bf16.mxu0 0
    %186 = vmatpush1.bf16.msra.mxu0 0
    %187 = vmatprep.mubr.bf16.mxu0 0
    %188 = vmatmul.mubr.bf16.gmra.mrb[0].mxu0 %v153
    %v189 = vpop.f32.mrb[0].mxu0
    %v190 = vadd.f32 0.0, %v189
    %v191 = vpop.f32.mrb[0].mxu0
    %v192 = vpop.f32.mrb[0].mxu0
    %v193 = vadd.f32 0.0, %v192
    %v194 = vpop.f32.mrb[0].mxu0
    %195 = vdwg.mxu0
    %v196 = vadd.f32 %v134, %v190
    %v197 = vadd.f32 %v135, %v193
    %198 = vst [vmem:[#allocation2] sm:$0xff] %v196
    %199 = vst [vmem:[#allocation2 + $0x8] sm:$0xff] %v197
    %v200 = vld [vmem:[#allocation2] sm:$0xff]
    %v201 = vld [vmem:[#allocation2 + $0x8] sm:$0xff]
    %v202 = vpack.c.bf16 %v201, %v200
    %v204 = vunpack.c.l.b16 %v202
    %v205 = vunpack.c.h.b16 %v202
    %v206 = vpack.c.b16 %v204, %v204
    %v207 = vpack.c.b16 %v205, %v205
    %210 = vst [vmem:[#allocation9] sm:$0xf] %v206
    %211 = vst [vmem:[#allocation9 + $0x4] sm:$0xf] %v207
    // Predicated region
    $region30: #{tpu_custom_call.1} parent=1 // pred_check
      _
    $region31: #{tpu_custom_call.1} parent=1 // pred_check_branch
      %213 = sbr.rel (0) target = $region33
    $region32: #{tpu_custom_call.1} parent=1 // pred_region
      %s215 = ssub.s32 128, 128
      %216 = vsyncadd [#allocation5], %s215
      %s217 = sshll.u32 [#allocation9], 4
      %s218 = int_to_ptr.vmem [resolvable:$true] %s217
      %223 = dma.vmem_to_hbm [thread:$0]  %s218, 128, %s4, [#allocation5], 64, 64, 4
    $region33: #{tpu_custom_call.1} parent=1 // pred_fallthru
      _
    // Predicated region
    $region34: #{tpu_custom_call.1} parent=1 // pred_check
      _
    $region35: #{tpu_custom_call.1} parent=1 // pred_check_branch
      %225 = sbr.rel (0) target = $region37
    $region36: #{tpu_custom_call.1} parent=1 // pred_region
      %226 = dma.done [#allocation5], 128
    $region37: #{tpu_custom_call.1} parent=1 // pred_fallthru
      _
    %227 = vsyncpa [#allocation4], 1
    %228 = vsyncpa [#allocation7], 1
    %229 = vsyncpa [#allocation5], 1

</llo_original>
